<compile_context>
chip_gen: v7x
topology: tpu7x:2x2x1
jax: 0.10.0
libtpu: 0.0.40
codegen_flags: <defaults>
</compile_context>

<pallas_src>
import functools

import jax
import jax.numpy as jnp
from jax.experimental import pallas as pl
from jax.experimental.pallas import tpu as pltpu


def _compose_kernel(x_ref, wt_ref, b_ref, r_ref, o_ref):
    """One (batch, pixel-tile) block of the ensemble.

    x_ref : [1, C_in, T]       VMEM  channels-first pixels (lane-dense pixel axis)
    wt_ref: [M*C_out, C_in]    VMEM  all member 1x1-conv weights, concatenated
    b_ref : [M*C_out, 1]       VMEM  concatenated biases
    r_ref : [C_out, M*C_out]   VMEM  member-reduction matrix (embeds norm. weights)
    o_ref : [1, C_out, T]      VMEM  normalized ensemble output
    """
    x = x_ref[0]                                               # [C_in, T]
    # One fused matmul for all M members: [M*C_out, C_in] @ [C_in, T].
    logits = jnp.dot(wt_ref[...], x, preferred_element_type=jnp.float32)
    logits = logits + b_ref[...]                               # bias, bcast over lanes
    probs = jax.nn.sigmoid(logits)                             # [M*C_out, T]  (EUP)
    # Weighted reduction over members as a second tiny MXU dot: [C_out, M*C_out]@[M*C_out, T].
    out = jnp.dot(r_ref[...], probs, preferred_element_type=jnp.float32)
    o_ref[0] = out.astype(o_ref.dtype)


def compose_model_forward(x_nchw, weights, biases, ensemble_weights, *,
                          normalize_ensemble_weights=True,
                          max_tile_pix=65536):
    """Ensemble forward (ComposeModel.forward).

    x_nchw           : [B, C_in, H, W]  float32
    weights          : [M, C_in, C_out] float32   (stacked 1x1 conv kernels)
    biases           : [M, C_out]       float32
    ensemble_weights : [M]              float32
    returns          : [B, C_out, H, W] float32
    """
    B, C_in, H, W = x_nchw.shape
    M, C_in_w, C_out = weights.shape
    assert C_in_w == C_in
    HW = H * W

    # Channels-first with pixel axis last -> pure reshape, no data movement.
    x = x_nchw.reshape(B, C_in, HW)

    # Concatenate member weights: row r = m*C_out + c holds weights[m, :, c].
    wt = jnp.transpose(weights, (0, 2, 1)).reshape(M * C_out, C_in)
    b = biases.reshape(M * C_out, 1)

    # Reduction matrix R[c, m*C_out + c] = w_m (pre-normalized if requested).
    ew = ensemble_weights
    if normalize_ensemble_weights:
        ew = ew / jnp.sum(ensemble_weights)
    eye = jnp.eye(C_out, dtype=jnp.float32)
    r_mat = jnp.transpose(ew[:, None, None] * eye[None], (1, 0, 2)).reshape(
        C_out, M * C_out)

    # Large lane-dense pixel tiles; full HW if it already fits.
    if HW <= max_tile_pix:
        tile = HW
        grid_j = 1
    else:
        tile = max_tile_pix                       # multiple of 128
        grid_j = pl.cdiv(HW, tile)                # last partial block is clipped

    out = pl.pallas_call(
        _compose_kernel,
        out_shape=jax.ShapeDtypeStruct((B, C_out, HW), jnp.float32),
        grid_spec=pltpu.PrefetchScalarGridSpec(
            num_scalar_prefetch=0,
            grid=(B, grid_j),
            in_specs=[
                pl.BlockSpec((1, C_in, tile), lambda bi, j: (bi, 0, j)),
                pl.BlockSpec((M * C_out, C_in), lambda bi, j: (0, 0)),
                pl.BlockSpec((M * C_out, 1), lambda bi, j: (0, 0)),
                pl.BlockSpec((C_out, M * C_out), lambda bi, j: (0, 0)),
            ],
            out_specs=pl.BlockSpec((1, C_out, tile), lambda bi, j: (bi, 0, j)),
        ),
        compiler_params=pltpu.CompilerParams(
            dimension_semantics=("parallel", "parallel"),
            vmem_limit_bytes=32 << 20,
        ),
    )(x, wt, b, r_mat)

    return out.reshape(B, C_out, H, W)


def _reference(x_nchw, weights, biases, ensemble_weights):
    """Pure-JAX reference mirroring ComposeModel.forward."""
    ret = 0.0
    for m in range(weights.shape[0]):
        logits = jnp.einsum("bchw,co->bohw", x_nchw, weights[m]) + biases[m][
            None, :, None, None
        ]
        pred = jax.nn.sigmoid(logits)
        ret = ret + pred * ensemble_weights[m]
    ret = ret / jnp.sum(ensemble_weights)
    return ret


if __name__ == "__main__":
    key = jax.random.PRNGKey(0)
    B, C_in, H, W = 2, 4, 16, 16      # input image batch (NCHW)
    C_out = 3                         # segmentation classes
    M = 3                             # number of ensemble members

    k_x, k_w, k_b, k_e = jax.random.split(key, 4)
    x = jax.random.normal(k_x, (B, C_in, H, W), dtype=jnp.float32)

    # Deterministic synthetic parameters for the M member models (1x1 convs).
    weights = 0.25 * jax.random.normal(k_w, (M, C_in, C_out), dtype=jnp.float32)
    biases = 0.1 * jax.random.normal(k_b, (M, C_out), dtype=jnp.float32)
    ensemble_weights = jnp.abs(
        jax.random.normal(k_e, (M,), dtype=jnp.float32)
    ) + 0.5

    out = compose_model_forward(x, weights, biases, ensemble_weights)
    out = jax.block_until_ready(out)

    ref = _reference(x, weights, biases, ensemble_weights)
    assert out.shape == (B, C_out, H, W)
    assert jnp.allclose(out, ref, rtol=1e-4, atol=1e-4)

    print("KERNEL_OK")
</pallas_src>

<mosaic_0001>
module attributes {stable_mosaic.version = 11 : i64} {
  func.func @_compose_kernel(%arg0: i32, %arg1: i32, %arg2: memref<1x4x256xf32, #tpu.memory_space<vmem>>, %arg3: memref<9x4xf32, #tpu.memory_space<vmem>>, %arg4: memref<9x1xf32, #tpu.memory_space<vmem>>, %arg5: memref<3x9xf32, #tpu.memory_space<vmem>>, %arg6: memref<1x3x256xf32, #tpu.memory_space<vmem>>) attributes {dimension_semantics = [#tpu.dimension_semantics<parallel>, #tpu.dimension_semantics<parallel>], iteration_bounds = array<i64: 2, 1>, scalar_prefetch = 0 : i64, scratch_operands = 0 : i64, tpu.core_type = #tpu.core_type<tc>, window_params = [{transform_indices = @transform_0, window_bounds = array<i64: 1, 4, 256>}, {pipeline_mode = #tpu.pipeline_mode<synchronous>, transform_indices = @transform_1, window_bounds = array<i64: 9, 4>}, {pipeline_mode = #tpu.pipeline_mode<synchronous>, transform_indices = @transform_2, window_bounds = array<i64: 9, 1>}, {pipeline_mode = #tpu.pipeline_mode<synchronous>, transform_indices = @transform_3, window_bounds = array<i64: 3, 9>}, {transform_indices = @transform_4, window_bounds = array<i64: 1, 3, 256>}]} {
    %c0 = arith.constant 0 : index
    %c0_0 = arith.constant 0 : index
    %c0_1 = arith.constant 0 : index
    %0 = vector.load %arg2[%c0, %c0_0, %c0_1] : memref<1x4x256xf32, #tpu.memory_space<vmem>>, vector<1x4x256xf32>
    %1 = vector.shape_cast %0 : vector<1x4x256xf32> to vector<4x256xf32>
    %c0_2 = arith.constant 0 : index
    %c0_3 = arith.constant 0 : index
    %2 = vector.load %arg3[%c0_2, %c0_3] : memref<9x4xf32, #tpu.memory_space<vmem>>, vector<9x4xf32>
    %cst = arith.constant dense<0.000000e+00> : vector<9x256xf32>
    %3 = tpu.matmul %2, %1, %cst {dimension_numbers = #tpu.dot_dimension_numbers<[1], [0], [0], [1], [0, 0, 1, 1], [], []>} : vector<9x4xf32>, vector<4x256xf32>, vector<9x256xf32> -> vector<9x256xf32>
    %c0_4 = arith.constant 0 : index
    %c0_5 = arith.constant 0 : index
    %4 = vector.load %arg4[%c0_4, %c0_5] : memref<9x1xf32, #tpu.memory_space<vmem>>, vector<9x1xf32>
    %5 = vector.broadcast %4 : vector<9x1xf32> to vector<9x256xf32>
    %6 = arith.addf %3, %5 : vector<9x256xf32>
    %7 = arith.negf %6 : vector<9x256xf32>
    %8 = math.exp %7 : vector<9x256xf32>
    %cst_6 = arith.constant 1.000000e+00 : f32
    %9 = vector.broadcast %cst_6 : f32 to vector<9x256xf32>
    %10 = arith.addf %9, %8 : vector<9x256xf32>
    %11 = arith.divf %9, %10 : vector<9x256xf32>
    %c0_7 = arith.constant 0 : index
    %c0_8 = arith.constant 0 : index
    %12 = vector.load %arg5[%c0_7, %c0_8] : memref<3x9xf32, #tpu.memory_space<vmem>>, vector<3x9xf32>
    %cst_9 = arith.constant dense<0.000000e+00> : vector<3x256xf32>
    %13 = tpu.matmul %12, %11, %cst_9 {dimension_numbers = #tpu.dot_dimension_numbers<[1], [0], [0], [1], [0, 0, 1, 1], [], []>} : vector<3x9xf32>, vector<9x256xf32>, vector<3x256xf32> -> vector<3x256xf32>
    %c0_10 = arith.constant 0 : index
    %c0_11 = arith.constant 0 : index
    %c0_12 = arith.constant 0 : index
    %14 = vector.load %arg6[%c0_10, %c0_11, %c0_12] : memref<1x3x256xf32, #tpu.memory_space<vmem>>, vector<1x3x256xf32>
    %15 = vector.shape_cast %14 : vector<1x3x256xf32> to vector<3x256xf32>
    %16 = vector.shape_cast %13 : vector<3x256xf32> to vector<1x3x256xf32>
    tpu.vector_store %arg6[%c0_10, %c0_11, %c0_12], %16 {strides = array<i32>} : memref<1x3x256xf32, #tpu.memory_space<vmem>>, vector<1x3x256xf32>,
    return
  }
  func.func @transform_0(%arg0: i32, %arg1: i32) -> (i32, i32, i32) {
    %c0_i32 = arith.constant 0 : i32
    %c0_i32_0 = arith.constant 0 : i32
    return %arg0, %c0_i32, %arg1 : i32, i32, i32
  }
  func.func @transform_1(%arg0: i32, %arg1: i32) -> (i32, i32) {
    %c0_i32 = arith.constant 0 : i32
    %c0_i32_0 = arith.constant 0 : i32
    %c0_i32_1 = arith.constant 0 : i32
    return %c0_i32, %c0_i32_0 : i32, i32
  }
  func.func @transform_2(%arg0: i32, %arg1: i32) -> (i32, i32) {
    %c0_i32 = arith.constant 0 : i32
    %c0_i32_0 = arith.constant 0 : i32
    %c0_i32_1 = arith.constant 0 : i32
    return %c0_i32, %c0_i32_0 : i32, i32
  }
  func.func @transform_3(%arg0: i32, %arg1: i32) -> (i32, i32) {
    %c0_i32 = arith.constant 0 : i32
    %c0_i32_0 = arith.constant 0 : i32
    %c0_i32_1 = arith.constant 0 : i32
    return %c0_i32, %c0_i32_0 : i32, i32
  }
  func.func @transform_4(%arg0: i32, %arg1: i32) -> (i32, i32, i32) {
    %c0_i32 = arith.constant 0 : i32
    %c0_i32_0 = arith.constant 0 : i32
    return %arg0, %c0_i32, %arg1 : i32, i32, i32
  }
}

</mosaic_0001>

<llo_original>
// kernel: tpu_custom_call.1
$region0: #{tpu_custom_call.1}
  #allocation0 [shape = 'u32[]', space=smem, size = 0x4, offset = 0x4, fixed_abs, tag = 'smem constant byte address 0x4 - core index']
  #allocation1 [shape = 'u32[144,128]{1,0:T(1,128)}', space=vmem, size = 0x12000, scoped, tag = 'internal scratch']
  %s0 = inlined_call_operand.vmem [shape: f32[2,4,256], index: 0, kind: input, shape index: {}]
  %s1 = inlined_call_operand.vmem [shape: f32[9,4], index: 1, kind: input, shape index: {}]
  %s2 = inlined_call_operand.vmem [shape: f32[9,1], index: 2, kind: input, shape index: {}]
  %s3 = inlined_call_operand.vmem [shape: f32[3,9], index: 3, kind: input, shape index: {}]
  %s4 = inlined_call_operand.vmem [shape: f32[2,3,256], index: 4, kind: output, shape index: {}]
  %s5 = sld [smem:[#allocation0]]
  $region49: #{tpu_custom_call.1} parent=0
    _
  %s7 = ssub.s32 1, %s5
  %s8 = scalar_select 0, %s7, %s5
  loop: start=0, step=1, limit=4
  $region2: #{tpu_custom_call.1} parent=0 // loop_pre_header
    _
  $region3: #{tpu_custom_call.1} parent=0 // loop_header
    %s10 = sphi 0, %s14
    %p11 = scmp.ge.s32.totalorder %s10, 4
    %s17 = sphi 0, %s29
    %s18 = sphi 0, %s25
    %s19 = sphi 0, %s17
    %s20 = sphi 0, %s18
    %s21 = sphi 0, %s19
    %s22 = sphi 0, %s20
    %s34 = sphi 0, %s36
    %s37 = sphi 0, %s34
    %s38 = sphi 0, %s37
    %s54 = sphi 0, %s38
    %s58 = sphi 0, %s58
    %s60 = sphi 0, %s58
    %s61 = sphi 0, %s60
    %s75 = sphi 0, %s61
    %s79 = sphi 0, %s79
    %s81 = sphi 0, %s79
    %s82 = sphi 0, %s81
    %s96 = sphi 0, %s82
    %s100 = sphi 0, %s100
    %s102 = sphi 0, %s100
    %s103 = sphi 0, %s102
    %s117 = sphi 0, %s103
    %s125 = sphi 0, %s127
    %s128 = sphi 0, %s125
    %s129 = sphi 0, %s128
    %s145 = sphi 0, %s129
  $region4: #{tpu_custom_call.1} parent=0 // loop_header_branch
    %13 = sbr.rel (%p11) target = $region8
  $region5: #{tpu_custom_call.1} parent=0 // loop_body
    %s15 = ssub.s32 %s10, 1
    %s16 = ssub.s32 %s10, 2
    %s23 = sadd.s32 1, %s18
    %p24 = scmp.ge.s32.totalorder %s23, 1
    %s25 = scalar_select %p24, 0, %s23
    %s26 = sadd.s32 1, %s17
    %s27 = scalar_select %p24, %s26, %s17
    %p28 = scmp.ge.s32.totalorder %s27, 2
    %s29 = scalar_select %p28, 0, %s27
    %s30 = ssub.s32 %s17, %s29
    %s31 = ssub.s32 %s18, %s25
    %s32 = sor.u32 %s30, %s31
    %p33 = scmp.eq.s32.totalorder %s32, 0
    %s35 = sadd.s32 %s34, 1
    %s36 = scalar_select %p33, %s34, %s35
    %p39 = pneg %p33
    %p40 = scmp.eq.s32.totalorder %s10, 1
    %p41 = por %p39, %p40
    %p42 = scmp.ne.s32.totalorder %s34, %s37
    %p43 = scmp.eq.s32.totalorder %s10, 0
    %p44 = por %p42, %p43
    %p45 = scmp.ne.s32.totalorder %s34, %s37
    %p46 = scmp.eq.s32.totalorder %s15, 1
    %p47 = por %p45, %p46
    %p48 = scmp.ne.s32.totalorder %s37, %s38
    %p49 = scmp.eq.s32.totalorder %s15, 0
    %p50 = por %p48, %p49
    %p51 = scmp.ne.s32.totalorder %s37, %s38
    %p52 = scmp.eq.s32.totalorder %s16, 1
    %p53 = por %p51, %p52
    %p55 = scmp.ne.s32.totalorder %s38, %s54
    %p56 = scmp.eq.s32.totalorder %s16, 0
    %p57 = por %p55, %p56
    %s59 = sadd.s32 %s58, 1
    %p62 = scmp.eq.s32.totalorder %s10, 1
    %p63 = scmp.ne.s32.totalorder %s58, %s60
    %p64 = scmp.eq.s32.totalorder %s10, 0
    %p65 = por %p63, %p64
    %p66 = scmp.ne.s32.totalorder %s58, %s60
    %p67 = scmp.eq.s32.totalorder %s15, 1
    %p68 = por %p66, %p67
    %p69 = scmp.ne.s32.totalorder %s60, %s61
    %p70 = scmp.eq.s32.totalorder %s15, 0
    %p71 = por %p69, %p70
    %p72 = scmp.ne.s32.totalorder %s60, %s61
    %p73 = scmp.eq.s32.totalorder %s16, 1
    %p74 = por %p72, %p73
    %p76 = scmp.ne.s32.totalorder %s61, %s75
    %p77 = scmp.eq.s32.totalorder %s16, 0
    %p78 = por %p76, %p77
    %s80 = sadd.s32 %s79, 1
    %p83 = scmp.eq.s32.totalorder %s10, 1
    %p84 = scmp.ne.s32.totalorder %s79, %s81
    %p85 = scmp.eq.s32.totalorder %s10, 0
    %p86 = por %p84, %p85
    %p87 = scmp.ne.s32.totalorder %s79, %s81
    %p88 = scmp.eq.s32.totalorder %s15, 1
    %p89 = por %p87, %p88
    %p90 = scmp.ne.s32.totalorder %s81, %s82
    %p91 = scmp.eq.s32.totalorder %s15, 0
    %p92 = por %p90, %p91
    %p93 = scmp.ne.s32.totalorder %s81, %s82
    %p94 = scmp.eq.s32.totalorder %s16, 1
    %p95 = por %p93, %p94
    %p97 = scmp.ne.s32.totalorder %s82, %s96
    %p98 = scmp.eq.s32.totalorder %s16, 0
    %p99 = por %p97, %p98
    %s101 = sadd.s32 %s100, 1
    %p104 = scmp.eq.s32.totalorder %s10, 1
    %p105 = scmp.ne.s32.totalorder %s100, %s102
    %p106 = scmp.eq.s32.totalorder %s10, 0
    %p107 = por %p105, %p106
    %p108 = scmp.ne.s32.totalorder %s100, %s102
    %p109 = scmp.eq.s32.totalorder %s15, 1
    %p110 = por %p108, %p109
    %p111 = scmp.ne.s32.totalorder %s102, %s103
    %p112 = scmp.eq.s32.totalorder %s15, 0
    %p113 = por %p111, %p112
    %p114 = scmp.ne.s32.totalorder %s102, %s103
    %p115 = scmp.eq.s32.totalorder %s16, 1
    %p116 = por %p114, %p115
    %p118 = scmp.ne.s32.totalorder %s103, %s117
    %p119 = scmp.eq.s32.totalorder %s16, 0
    %p120 = por %p118, %p119
    %s121 = ssub.s32 %s17, %s29
    %s122 = ssub.s32 %s18, %s25
    %s123 = sor.u32 %s121, %s122
    %p124 = scmp.eq.s32.totalorder %s123, 0
    %s126 = sadd.s32 %s125, 1
    %s127 = scalar_select %p124, %s125, %s126
    %p130 = pneg %p124
    %p131 = scmp.eq.s32.totalorder %s10, 1
    %p132 = por %p130, %p131
    %p133 = scmp.ne.s32.totalorder %s125, %s128
    %p134 = scmp.eq.s32.totalorder %s10, 0
    %p135 = por %p133, %p134
    %p136 = scmp.ne.s32.totalorder %s125, %s128
    %p137 = scmp.eq.s32.totalorder %s15, 1
    %p138 = por %p136, %p137
    %p139 = scmp.ne.s32.totalorder %s128, %s129
    %p140 = scmp.eq.s32.totalorder %s15, 0
    %p141 = por %p139, %p140
    %p142 = scmp.ne.s32.totalorder %s128, %s129
    %p143 = scmp.eq.s32.totalorder %s16, 1
    %p144 = por %p142, %p143
    %p146 = scmp.ne.s32.totalorder %s129, %s145
    %p147 = scmp.eq.s32.totalorder %s16, 0
    %p148 = por %p146, %p147
    %p149 = scmp.le.s32.totalorder 1, %s10
    %p150 = scmp.lt.s32.totalorder %s10, 3
    %p151 = pnand %p149, %p150
    %p152 = pneg %p151
    // Predicated region
    $region9: #{tpu_custom_call.1} parent=5 // pred_check
      _
    $region10: #{tpu_custom_call.1} parent=5 // pred_check_branch
      %154 = sbr.rel (%p151) target = $region12
    $region11: #{tpu_custom_call.1} parent=5 // pred_region
      %s155 = ssub.s32 %s10, 1
      // Predicated region
      $region13: #{tpu_custom_call.1} parent=11 // pred_check
        %p156 = pneg %p71
      $region14: #{tpu_custom_call.1} parent=11 // pred_check_branch
        %158 = sbr.rel (%p156) target = $region16
      $region15: #{tpu_custom_call.1} parent=11 // pred_region
        _
      $region16: #{tpu_custom_call.1} parent=11 // pred_fallthru
        _
      // Predicated region
      $region17: #{tpu_custom_call.1} parent=11 // pred_check
        %p159 = pneg %p92
      $region18: #{tpu_custom_call.1} parent=11 // pred_check_branch
        %161 = sbr.rel (%p159) target = $region20
      $region19: #{tpu_custom_call.1} parent=11 // pred_region
        _
      $region20: #{tpu_custom_call.1} parent=11 // pred_fallthru
        _
      // Predicated region
      $region21: #{tpu_custom_call.1} parent=11 // pred_check
        %p162 = pneg %p113
      $region22: #{tpu_custom_call.1} parent=11 // pred_check_branch
        %164 = sbr.rel (%p162) target = $region24
      $region23: #{tpu_custom_call.1} parent=11 // pred_region
        _
      $region24: #{tpu_custom_call.1} parent=11 // pred_fallthru
        _
    $region12: #{tpu_custom_call.1} parent=5 // pred_fallthru
      _
    %p165 = scmp.lt.s32.totalorder %s10, 2
    // Predicated region
    $region25: #{tpu_custom_call.1} parent=5 // pred_check
      %p166 = pneg %p165
    $region26: #{tpu_custom_call.1} parent=5 // pred_check_branch
      %168 = sbr.rel (%p166) target = $region28
    $region27: #{tpu_custom_call.1} parent=5 // pred_region
      // Predicated region
      $region29: #{tpu_custom_call.1} parent=27 // pred_check
        %p169 = pneg %p44
      $region30: #{tpu_custom_call.1} parent=27 // pred_check_branch
        %171 = sbr.rel (%p169) target = $region32
      $region31: #{tpu_custom_call.1} parent=27 // pred_region
        %s172 = smul.u32 2, %s18
        %p173 = scmp.lt.s32.totalorder %s17, 1
        %s174 = scalar_select %p173, %s17, 1
        %p175 = scmp.lt.s32.totalorder %s172, 1
        %s176 = scalar_select %p175, %s172, 1
        %s177 = smul.addr %s174, 2
        %s178 = sadd.s32 %s176, %s177
        %s179 = smul.addr %s178, 4
        %s180 = scalar_lea.vmem %s0, %s179
        %s181 = smul.u32 2, %s18
      $region32: #{tpu_custom_call.1} parent=27 // pred_fallthru
        _
    $region28: #{tpu_custom_call.1} parent=5 // pred_fallthru
      _
    %p182 = scmp.le.s32.totalorder 1, %s10
    %p183 = scmp.lt.s32.totalorder %s10, 3
    %p184 = pnand %p182, %p183
    %p185 = pneg %p184
    // Predicated region
    $region33: #{tpu_custom_call.1} parent=5 // pred_check
      _
    $region34: #{tpu_custom_call.1} parent=5 // pred_check_branch
      %187 = sbr.rel (%p184) target = $region36
    $region35: #{tpu_custom_call.1} parent=5 // pred_region
      %s188 = ssub.s32 %s10, 1
      %s189 = smul.u32 2, %s20
      %p190 = scmp.lt.s32.totalorder %s19, 1
      %s191 = scalar_select %p190, %s19, 1
      %p192 = scmp.lt.s32.totalorder %s189, 1
      %s193 = scalar_select %p192, %s189, 1
      %s194 = smul.addr %s191, 2
      %s195 = sadd.s32 %s193, %s194
      %s196 = smul.addr %s195, 4
      %s197 = scalar_lea.vmem %s0, %s196
      %p198 = pneg %p50
      %p199 = pneg %p47
      %p200 = pneg %p71
      %p201 = pneg %p68
      %p202 = pneg %p92
      %p203 = pneg %p89
      %p204 = pneg %p113
      %p205 = pneg %p110
      %p206 = pneg %p141
      %p207 = pneg %p138
      %s208 = smul.u32 2, %s20
      %p209 = scmp.lt.s32.totalorder %s19, 1
      %s210 = scalar_select %p209, %s19, 1
      %p211 = scmp.lt.s32.totalorder %s208, 1
      %s212 = scalar_select %p211, %s208, 1
      %s213 = smul.addr %s210, 2
      %s214 = sadd.s32 %s212, %s213
      %s215 = smul.addr %s214, 4
      %s216 = scalar_lea.vmem %s4, %s215
      %s217 = smul.u32 2, %s20
      %p218 = scmp.lt.s32.totalorder %s19, 1
      %s219 = scalar_select %p218, %s19, 1
      %p220 = scmp.lt.s32.totalorder %s217, 1
      %s221 = scalar_select %p220, %s217, 1
      %s222 = smul.addr %s219, 2
      %s223 = sadd.s32 %s221, %s222
      %s224 = smul.addr %s223, 4
      %s225 = scalar_lea.vmem %s0, %s224
      %s226 = smul.u32 2, %s20
      %s227 = smul.u32 2, %s20
      %p228 = scmp.lt.s32.totalorder %s19, 1
      %s229 = scalar_select %p228, %s19, 1
      %p230 = scmp.lt.s32.totalorder %s227, 1
      %s231 = scalar_select %p230, %s227, 1
      %s232 = smul.addr %s229, 2
      %s233 = sadd.s32 %s231, %s232
      %s234 = smul.addr %s233, 4
      %s235 = scalar_lea.vmem %s4, %s234
      %s236 = smul.u32 2, %s20
      %v237 = vld [vmem:[%s225] sm:$0xff]
      %v238 = vld [vmem:[%s1] sm:$0xff]
      %v239 = vld [vmem:[%s1 + $0x8] sm:$0x1]
      %v240 = vld [vmem:[%s2] sm:$0xff]
      %v241 = vld [vmem:[%s2 + $0x8] sm:$0x1]
      %243 = vset.pattern.permute.xlu0 0
      %244 = vperm.xlu0 %243, %v240
      %v245 = vpop.permute.xlu0 %244
      %248 = vset.pattern.permute.xlu0 0
      %249 = vperm.xlu0 %248, %v241
      %v250 = vpop.permute.xlu0 %249
      %v253 = vcombine.high %v237, %v237
      %vm254 = vcmask 31744
      %v256 = vsel %vm254, %v238, 0
      %v259 = vsel %vm254, %v239, 0
      %vm261 = vcmask 1043456
      %v262 = vsel %vm261, %v237, 0
      %v264 = vsel %vm261, %v253, 0
      %266 = vmatprep.subr.mxu0 %v264
      %267 = vmatpush1.msra.mxu0 %v262
      %268 = vmatprep.subr.mxu0 0.0
      %269 = vmatpush1.msra.mxu0 0.0
      %270 = vmatprep.subr.mxu0 0.0
      %271 = vmatpush1.msra.mxu0 0.0
      %272 = vmatprep.subr.mxu0 0.0
      %273 = vmatpush1.msra.mxu0 0.0
      %274 = vmatprep.subr.mxu0 0.0
      %275 = vmatpush1.msra.mxu0 0.0
      %276 = vmatprep.subr.mxu0 0.0
      %277 = vmatpush1.msra.mxu0 0.0
      %278 = vmatprep.subr.mxu0 0.0
      %279 = vmatpush1.msra.mxu0 0.0
      %280 = vmatprep.subr.mxu0 0.0
      %281 = vmatpush1.msra.mxu0 0.0
      %282 = vmatprep.subr.mxu0 0.0
      %283 = vmatpush1.msra.mxu0 0.0
      %284 = vmatprep.subr.mxu0 0.0
      %285 = vmatpush1.msra.mxu0 0.0
      %286 = vmatprep.subr.mxu0 0.0
      %287 = vmatpush1.msra.mxu0 0.0
      %288 = vmatprep.subr.mxu0 0.0
      %289 = vmatpush1.msra.mxu0 0.0
      %290 = vmatprep.subr.mxu0 0.0
      %291 = vmatpush1.msra.mxu0 0.0
      %292 = vmatprep.subr.mxu0 0.0
      %293 = vmatpush1.msra.mxu0 0.0
      %294 = vmatprep.subr.mxu0 0.0
      %295 = vmatpush1.msra.mxu0 0.0
      %296 = vmatprep.subr.mxu0 0.0
      %297 = vmatpush1.msra.mxu0 0.0
      %298 = vmatprep.subr.mxu0 0.0
      %299 = vmatpush1.msra.mxu0 0.0
      %300 = vmatprep.subr.mxu0 0.0
      %301 = vmatpush1.msra.mxu0 0.0
      %302 = vmatprep.subr.mxu0 0.0
      %303 = vmatpush1.msra.mxu0 0.0
      %304 = vmatprep.subr.mxu0 0.0
      %305 = vmatpush1.msra.mxu0 0.0
      %306 = vmatprep.subr.mxu0 0.0
      %307 = vmatpush1.msra.mxu0 0.0
      %308 = vmatprep.subr.mxu0 0.0
      %309 = vmatpush1.msra.mxu0 0.0
      %310 = vmatprep.subr.mxu0 0.0
      %311 = vmatpush1.msra.mxu0 0.0
      %312 = vmatprep.subr.mxu0 0.0
      %313 = vmatpush1.msra.mxu0 0.0
      %314 = vmatprep.subr.mxu0 0.0
      %315 = vmatpush1.msra.mxu0 0.0
      %316 = vmatprep.subr.mxu0 0.0
      %317 = vmatpush1.msra.mxu0 0.0
      %318 = vmatprep.subr.mxu0 0.0
      %319 = vmatpush1.msra.mxu0 0.0
      %320 = vmatprep.subr.mxu0 0.0
      %321 = vmatpush1.msra.mxu0 0.0
      %322 = vmatprep.subr.mxu0 0.0
      %323 = vmatpush1.msra.mxu0 0.0
      %324 = vmatprep.subr.mxu0 0.0
      %325 = vmatpush1.msra.mxu0 0.0
      %326 = vmatprep.subr.mxu0 0.0
      %327 = vmatpush1.msra.mxu0 0.0
      %328 = vmatprep.subr.mxu0 0.0
      %329 = vmatpush1.msra.mxu0 0.0
      %330 = vmatprep.mubr.f32.mxu0 0.0
      %331 = vmatmul.mubr.f32.gmra.mrb[0].mxu0 %v256
      %v332 = vpop.f32.mrb[0].mxu0
      %v333 = vadd.f32 %v245, %v332
      %v334 = vpop.f32.mrb[0].mxu0
      %v335 = vadd.f32 %v245, %v334
      %336 = vmatprep.mubr.f32.mxu0 0.0
      %337 = vmatmul.mubr.f32.gmra.mrb[0].mxu0 %v259
      %v338 = vpop.f32.mrb[0].mxu0
      %v339 = vadd.f32 %v250, %v338
      %v340 = vpop.f32.mrb[0].mxu0
      %v341 = vadd.f32 %v250, %v340
      %342 = vdwg.mxu0
      %v343 = vxor.u32 %v333, 2147483648
      %v344 = vxor.u32 %v335, 2147483648
      %v345 = vxor.u32 %v339, 2147483648
      %v346 = vxor.u32 %v341, 2147483648
      %v347 = vmul.f32 %v343, 1.442695
      %v348 = vpow.pop %v347
      %v349 = vmul.f32 %v344, 1.442695
      %v350 = vpow.pop %v349
      %v351 = vmul.f32 %v345, 1.442695
      %v352 = vpow.pop %v351
      %v353 = vmul.f32 %v346, 1.442695
      %v354 = vpow.pop %v353
      %v355 = vadd.f32 %v348, 1.0
      %v356 = vadd.f32 %v350, 1.0
      %v357 = vadd.f32 %v352, 1.0
      %v358 = vadd.f32 %v354, 1.0
      %v359 = vrcp.pop %v355
      %v360 = vmul.f32 1.0, %v359
      %v361 = vrcp.pop %v356
      %v362 = vmul.f32 1.0, %v361
      %v363 = vrcp.pop %v357
      %v364 = vmul.f32 1.0, %v363
      %v365 = vrcp.pop %v358
      %v366 = vmul.f32 1.0, %v365
      %v367 = vld [vmem:[%s3] sm:$0x7]
      %vm368 = vcmask 72704
      %v370 = vsel %vm368, %v367, 0
      %vm372 = vcmask 1040384
      %v374 = vsel %vm372, %v364, 0
      %v377 = vsel %vm372, %v366, 0
      %379 = vmatprep.subr.mxu0 %v362
      %380 = vmatpush1.msra.mxu0 %v360
      %381 = vmatprep.subr.mxu0 %v377
      %382 = vmatpush1.msra.mxu0 %v374
      %383 = vmatprep.subr.mxu0 0.0
      %384 = vmatpush1.msra.mxu0 0.0
      %385 = vmatprep.subr.mxu0 0.0
      %386 = vmatpush1.msra.mxu0 0.0
      %387 = vmatprep.subr.mxu0 0.0
      %388 = vmatpush1.msra.mxu0 0.0
      %389 = vmatprep.subr.mxu0 0.0
      %390 = vmatpush1.msra.mxu0 0.0
      %391 = vmatprep.subr.mxu0 0.0
      %392 = vmatpush1.msra.mxu0 0.0
      %393 = vmatprep.subr.mxu0 0.0
      %394 = vmatpush1.msra.mxu0 0.0
      %395 = vmatprep.subr.mxu0 0.0
      %396 = vmatpush1.msra.mxu0 0.0
      %397 = vmatprep.subr.mxu0 0.0
      %398 = vmatpush1.msra.mxu0 0.0
      %399 = vmatprep.subr.mxu0 0.0
      %400 = vmatpush1.msra.mxu0 0.0
      %401 = vmatprep.subr.mxu0 0.0
      %402 = vmatpush1.msra.mxu0 0.0
      %403 = vmatprep.subr.mxu0 0.0
      %404 = vmatpush1.msra.mxu0 0.0
      %405 = vmatprep.subr.mxu0 0.0
      %406 = vmatpush1.msra.mxu0 0.0
      %407 = vmatprep.subr.mxu0 0.0
      %408 = vmatpush1.msra.mxu0 0.0
      %409 = vmatprep.subr.mxu0 0.0
      %410 = vmatpush1.msra.mxu0 0.0
      %411 = vmatprep.subr.mxu0 0.0
      %412 = vmatpush1.msra.mxu0 0.0
      %413 = vmatprep.subr.mxu0 0.0
      %414 = vmatpush1.msra.mxu0 0.0
      %415 = vmatprep.subr.mxu0 0.0
      %416 = vmatpush1.msra.mxu0 0.0
      %417 = vmatprep.subr.mxu0 0.0
      %418 = vmatpush1.msra.mxu0 0.0
      %419 = vmatprep.subr.mxu0 0.0
      %420 = vmatpush1.msra.mxu0 0.0
      %421 = vmatprep.subr.mxu0 0.0
      %422 = vmatpush1.msra.mxu0 0.0
      %423 = vmatprep.subr.mxu0 0.0
      %424 = vmatpush1.msra.mxu0 0.0
      %425 = vmatprep.subr.mxu0 0.0
      %426 = vmatpush1.msra.mxu0 0.0
      %427 = vmatprep.subr.mxu0 0.0
      %428 = vmatpush1.msra.mxu0 0.0
      %429 = vmatprep.subr.mxu0 0.0
      %430 = vmatpush1.msra.mxu0 0.0
      %431 = vmatprep.subr.mxu0 0.0
      %432 = vmatpush1.msra.mxu0 0.0
      %433 = vmatprep.subr.mxu0 0.0
      %434 = vmatpush1.msra.mxu0 0.0
      %435 = vmatprep.subr.mxu0 0.0
      %436 = vmatpush1.msra.mxu0 0.0
      %437 = vmatprep.subr.mxu0 0.0
      %438 = vmatpush1.msra.mxu0 0.0
      %439 = vmatprep.subr.mxu0 0.0
      %440 = vmatpush1.msra.mxu0 0.0
      %441 = vmatprep.subr.mxu0 0.0
      %442 = vmatpush1.msra.mxu0 0.0
      %443 = vmatprep.mubr.f32.mxu0 0.0
      %444 = vmatmul.mubr.f32.gmra.mrb[0].mxu0 %v370
      %v445 = vpop.f32.mrb[0].mxu0
      %v446 = vadd.f32 0.0, %v445
      %v447 = vpop.f32.mrb[0].mxu0
      %v448 = vadd.f32 0.0, %v447
      %449 = vdwg.mxu0
      %v452 = vcombine.low %v446, %v448
      %454 = vst [vmem:[%s235] sm:$0x77] %v452
      %s455 = smul.u32 2, %s20
      %p456 = scmp.lt.s32.totalorder %s19, 1
      %s457 = scalar_select %p456, %s19, 1
      %p458 = scmp.lt.s32.totalorder %s455, 1
      %s459 = scalar_select %p458, %s455, 1
      %s460 = smul.addr %s457, 2
      %s461 = sadd.s32 %s459, %s460
      %s462 = smul.addr %s461, 4
      %s463 = scalar_lea.vmem %s4, %s462
      // Predicated region
      $region37: #{tpu_custom_call.1} parent=35 // pred_check
        %p464 = pneg %p138
      $region38: #{tpu_custom_call.1} parent=35 // pred_check_branch
        %466 = sbr.rel (%p464) target = $region40
      $region39: #{tpu_custom_call.1} parent=35 // pred_region
        %s467 = smul.u32 2, %s20
      $region40: #{tpu_custom_call.1} parent=35 // pred_fallthru
        _
    $region36: #{tpu_custom_call.1} parent=5 // pred_fallthru
      _
    %p468 = scmp.le.s32.totalorder 2, %s10
    // Predicated region
    $region41: #{tpu_custom_call.1} parent=5 // pred_check
      %p469 = pneg %p468
    $region42: #{tpu_custom_call.1} parent=5 // pred_check_branch
      %471 = sbr.rel (%p469) target = $region44
    $region43: #{tpu_custom_call.1} parent=5 // pred_region
      %s472 = ssub.s32 %s10, 2
      // Predicated region
      $region45: #{tpu_custom_call.1} parent=43 // pred_check
        %p473 = pneg %p144
      $region46: #{tpu_custom_call.1} parent=43 // pred_check_branch
        %475 = sbr.rel (%p473) target = $region48
      $region47: #{tpu_custom_call.1} parent=43 // pred_region
        %s476 = smul.u32 2, %s22
        %p477 = scmp.lt.s32.totalorder %s21, 1
        %s478 = scalar_select %p477, %s21, 1
        %p479 = scmp.lt.s32.totalorder %s476, 1
        %s480 = scalar_select %p479, %s476, 1
        %s481 = smul.addr %s478, 2
        %s482 = sadd.s32 %s480, %s481
        %s483 = smul.addr %s482, 4
        %s484 = scalar_lea.vmem %s4, %s483
      $region48: #{tpu_custom_call.1} parent=43 // pred_fallthru
        _
    $region44: #{tpu_custom_call.1} parent=5 // pred_fallthru
      _
  $region6: #{tpu_custom_call.1} parent=0 // loop_footer
    %s14 = sadd.s32 1, %s10
  $region7: #{tpu_custom_call.1} parent=0 // loop_footer_branch
    %9 = sbr.rel target = $region3
  $region8: #{tpu_custom_call.1} parent=0 // loop_exit
    _

</llo_original>
